<compile_context>
chip_gen: v7x
topology: tpu7x:2x2x1
jax: 0.10.0
libtpu: 0.0.40
codegen_flags: <defaults>
</compile_context>

<pallas_src>
import functools

import jax
import jax.numpy as jnp
from jax.experimental import pallas as pl
from jax.experimental.pallas import tpu as pltpu

START = 0.0
STOP = 5.0
NUM_GAUSSIANS = 50


def _round_up(x, m):
    return ((x + m - 1) // m) * m


def _gaussian_smear_kernel(dist_ref, out_ref, *, coeff, start, step):
    # dist_ref: (TILE_N, 1) f32, out_ref: (TILE_N, G) f32
    # Offsets are compile-time derivable: build one (1, G) row per step (cheap)
    # instead of a full (TILE_N, G) iota per element.
    g = jax.lax.broadcasted_iota(jnp.int32, (1, out_ref.shape[1]), 1)
    offsets = start + step * g.astype(jnp.float32)          # (1, G)
    d = dist_ref[...] - offsets                              # (TILE_N, G)
    out_ref[...] = jnp.exp(coeff * (d * d))                  # coeff < 0 -> no overflow


def gaussian_smearing(dist, *, start=START, stop=STOP,
                      num_gaussians=NUM_GAUSSIANS, tile_n=4096):
    """JAX/Pallas equivalent of torch: exp(coeff * (dist.view(-1,1) - offset)**2).

    Returns (dist.size, num_gaussians) float32.
    """
    assert num_gaussians >= 2, "num_gaussians must be >= 2 (step would divide by zero)"
    n = int(dist.size)
    if n == 0:
        return jnp.zeros((0, num_gaussians), jnp.float32)

    step = (stop - start) / (num_gaussians - 1)
    coeff = -0.5 / step ** 2

    # Row tile: big enough to amortize per-step overhead, 8-aligned, never much
    # larger than the problem size so tiny inputs stay single-block.
    tile = _round_up(min(tile_n, _round_up(n, 8)), 8)

    dist_flat = dist.reshape(-1, 1).astype(jnp.float32)

    kernel = functools.partial(
        _gaussian_smear_kernel,
        coeff=float(coeff), start=float(start), step=float(step))

    out = pl.pallas_call(
        kernel,
        out_shape=jax.ShapeDtypeStruct((n, num_gaussians), jnp.float32),
        grid_spec=pltpu.PrefetchScalarGridSpec(
            num_scalar_prefetch=0,
            grid=(pl.cdiv(n, tile),),
            in_specs=[
                # (tile, 1): last dim equals full array dim, row dim 8-aligned.
                pl.BlockSpec((tile, 1), lambda i: (i, 0)),
            ],
            # Full-width output block -> contiguous tile*200 B writeback per step,
            # no post-kernel slice needed.
            out_specs=pl.BlockSpec((tile, num_gaussians), lambda i: (i, 0)),
        ),
        compiler_params=pltpu.CompilerParams(
            dimension_semantics=("parallel",)),
    )(dist_flat)

    return out


def emb_forward(dist):
    """JAX equivalent of the PyTorch `emb.forward`."""
    return gaussian_smearing(dist)


def _reference(dist):
    offset = jnp.linspace(START, STOP, NUM_GAUSSIANS, dtype=jnp.float32)
    step = (STOP - START) / (NUM_GAUSSIANS - 1)
    coeff = -0.5 / step ** 2
    return jnp.exp(coeff * (dist.reshape(-1, 1).astype(jnp.float32)
                            - offset.reshape(1, -1)) ** 2)


if __name__ == "__main__":
    key = jax.random.PRNGKey(0)

    # Test 1: block-aligned case (8*32 = 256 rows, single block).
    dist = jax.random.uniform(key, (8, 32), jnp.float32, minval=0.0, maxval=5.0)
    out = emb_forward(dist)
    out = jax.block_until_ready(out)
    ref = _reference(dist)
    assert out.shape == (dist.size, NUM_GAUSSIANS), out.shape
    assert jnp.allclose(out, ref, atol=5e-5, rtol=5e-5)

    # Test 2: ragged case (225 rows with tile=64 -> 4 grid steps, last one partial)
    # exercises Pallas masking of the final block on read and write.
    key2 = jax.random.PRNGKey(1)
    dist2 = jax.random.uniform(key2, (25, 9), jnp.float32, minval=0.0, maxval=5.0)
    out2 = gaussian_smearing(dist2, tile_n=64)
    out2 = jax.block_until_ready(out2)
    ref2 = _reference(dist2)
    assert out2.shape == (dist2.size, NUM_GAUSSIANS), out2.shape
    assert jnp.allclose(out2, ref2, atol=5e-5, rtol=5e-5)

    print("KERNEL_OK")
</pallas_src>

<mosaic_0001>
module attributes {stable_mosaic.version = 11 : i64} {
  func.func @_gaussian_smear_kernel(%arg0: i32, %arg1: memref<256x1xf32, #tpu.memory_space<vmem>>, %arg2: memref<256x50xf32, #tpu.memory_space<vmem>>) attributes {dimension_semantics = [#tpu.dimension_semantics<parallel>], iteration_bounds = array<i64: 1>, scalar_prefetch = 0 : i64, scratch_operands = 0 : i64, tpu.core_type = #tpu.core_type<tc>, window_params = [{transform_indices = @transform_0, window_bounds = array<i64: 256, 1>}, {transform_indices = @transform_1, window_bounds = array<i64: 256, 50>}]} {
    %0 = tpu.iota {dimensions = array<i32: 1>} : vector<1x50xi32>
    %1 = arith.sitofp %0 : vector<1x50xi32> to vector<1x50xf32>
    %cst = arith.constant 0.10204082 : f32
    %2 = vector.broadcast %cst : f32 to vector<1x50xf32>
    %3 = arith.mulf %2, %1 : vector<1x50xf32>
    %cst_0 = arith.constant 0.000000e+00 : f32
    %4 = vector.broadcast %cst_0 : f32 to vector<1x50xf32>
    %5 = arith.addf %4, %3 : vector<1x50xf32>
    %c0 = arith.constant 0 : index
    %c0_1 = arith.constant 0 : index
    %6 = vector.load %arg1[%c0, %c0_1] : memref<256x1xf32, #tpu.memory_space<vmem>>, vector<256x1xf32>
    %7 = vector.broadcast %6 : vector<256x1xf32> to vector<256x50xf32>
    %8 = vector.broadcast %5 : vector<1x50xf32> to vector<256x50xf32>
    %9 = arith.subf %7, %8 : vector<256x50xf32>
    %10 = arith.mulf %9, %9 : vector<256x50xf32>
    %cst_2 = arith.constant -4.802000e+01 : f32
    %11 = vector.broadcast %cst_2 : f32 to vector<256x50xf32>
    %12 = arith.mulf %11, %10 : vector<256x50xf32>
    %13 = math.exp %12 : vector<256x50xf32>
    %c0_3 = arith.constant 0 : index
    %c0_4 = arith.constant 0 : index
    %14 = vector.load %arg2[%c0_3, %c0_4] : memref<256x50xf32, #tpu.memory_space<vmem>>, vector<256x50xf32>
    tpu.vector_store %arg2[%c0_3, %c0_4], %13 {strides = array<i32>} : memref<256x50xf32, #tpu.memory_space<vmem>>, vector<256x50xf32>,
    return
  }
  func.func @transform_0(%arg0: i32) -> (i32, i32) {
    %c0_i32 = arith.constant 0 : i32
    %c0_i32_0 = arith.constant 0 : i32
    return %arg0, %c0_i32 : i32, i32
  }
  func.func @transform_1(%arg0: i32) -> (i32, i32) {
    %c0_i32 = arith.constant 0 : i32
    %c0_i32_0 = arith.constant 0 : i32
    return %arg0, %c0_i32 : i32, i32
  }
}

</mosaic_0001>

<llo_original>
// kernel: tpu_custom_call.1
$region0: #{tpu_custom_call.1}
  #allocation0 [shape = 'u32[]', space=smem, size = 0x4, offset = 0x4, fixed_abs, tag = 'smem constant byte address 0x4 - core index']
  #allocation1 [shape = 'u32[144,128]{1,0:T(1,128)}', space=vmem, size = 0x12000, scoped, tag = 'internal scratch']
  %s0 = inlined_call_operand.vmem [shape: f32[256,1], index: 0, kind: input, shape index: {}]
  %s1 = inlined_call_operand.vmem [shape: f32[256,50], index: 1, kind: output, shape index: {}]
  %s2 = sld [smem:[#allocation0]]
  $region14: #{tpu_custom_call.1} parent=0
    _
  %s4 = ssub.s32 1, %s2
  %s5 = scalar_select 0, %s4, %s2
  // Predicated region
  $region2: #{tpu_custom_call.1} parent=0 // pred_check
    _
  $region3: #{tpu_custom_call.1} parent=0 // pred_check_branch
    %7 = sbr.rel (0) target = $region5
  $region4: #{tpu_custom_call.1} parent=0 // pred_region
    _
  $region5: #{tpu_custom_call.1} parent=0 // pred_fallthru
    _
  %v8 = vlaneseq
  %v9 = vand.u32 %v8, 127
  %v10 = vcvt.s32.f32 %v9
  %v11 = vmul.f32 %v10, 0.10204082
  %v12 = vadd.f32 %v11, 0.0
  %v13 = vld [vmem:[%s0] sm:$0xff]
  %v14 = vld [vmem:[%s0 + $0x8] sm:$0xff]
  %v15 = vld [vmem:[%s0 + $0x10] sm:$0xff]
  %v16 = vld [vmem:[%s0 + $0x18] sm:$0xff]
  %v17 = vld [vmem:[%s0 + $0x20] sm:$0xff]
  %v18 = vld [vmem:[%s0 + $0x28] sm:$0xff]
  %v19 = vld [vmem:[%s0 + $0x30] sm:$0xff]
  %v20 = vld [vmem:[%s0 + $0x38] sm:$0xff]
  %v21 = vld [vmem:[%s0 + $0x40] sm:$0xff]
  %v22 = vld [vmem:[%s0 + $0x48] sm:$0xff]
  %v23 = vld [vmem:[%s0 + $0x50] sm:$0xff]
  %v24 = vld [vmem:[%s0 + $0x58] sm:$0xff]
  %v25 = vld [vmem:[%s0 + $0x60] sm:$0xff]
  %v26 = vld [vmem:[%s0 + $0x68] sm:$0xff]
  %v27 = vld [vmem:[%s0 + $0x70] sm:$0xff]
  %v28 = vld [vmem:[%s0 + $0x78] sm:$0xff]
  %v29 = vld [vmem:[%s0 + $0x80] sm:$0xff]
  %v30 = vld [vmem:[%s0 + $0x88] sm:$0xff]
  %v31 = vld [vmem:[%s0 + $0x90] sm:$0xff]
  %v32 = vld [vmem:[%s0 + $0x98] sm:$0xff]
  %v33 = vld [vmem:[%s0 + $0xa0] sm:$0xff]
  %v34 = vld [vmem:[%s0 + $0xa8] sm:$0xff]
  %v35 = vld [vmem:[%s0 + $0xb0] sm:$0xff]
  %v36 = vld [vmem:[%s0 + $0xb8] sm:$0xff]
  %v37 = vld [vmem:[%s0 + $0xc0] sm:$0xff]
  %v38 = vld [vmem:[%s0 + $0xc8] sm:$0xff]
  %v39 = vld [vmem:[%s0 + $0xd0] sm:$0xff]
  %v40 = vld [vmem:[%s0 + $0xd8] sm:$0xff]
  %v41 = vld [vmem:[%s0 + $0xe0] sm:$0xff]
  %v42 = vld [vmem:[%s0 + $0xe8] sm:$0xff]
  %v43 = vld [vmem:[%s0 + $0xf0] sm:$0xff]
  %v44 = vld [vmem:[%s0 + $0xf8] sm:$0xff]
  %46 = vset.pattern.permute.xlu0 0
  %47 = vperm.xlu0 %46, %v13
  %v48 = vpop.permute.xlu0 %47
  %51 = vset.pattern.permute.xlu0 0
  %52 = vperm.xlu0 %51, %v14
  %v53 = vpop.permute.xlu0 %52
  %56 = vset.pattern.permute.xlu0 0
  %57 = vperm.xlu0 %56, %v15
  %v58 = vpop.permute.xlu0 %57
  %61 = vset.pattern.permute.xlu0 0
  %62 = vperm.xlu0 %61, %v16
  %v63 = vpop.permute.xlu0 %62
  %66 = vset.pattern.permute.xlu0 0
  %67 = vperm.xlu0 %66, %v17
  %v68 = vpop.permute.xlu0 %67
  %71 = vset.pattern.permute.xlu0 0
  %72 = vperm.xlu0 %71, %v18
  %v73 = vpop.permute.xlu0 %72
  %76 = vset.pattern.permute.xlu0 0
  %77 = vperm.xlu0 %76, %v19
  %v78 = vpop.permute.xlu0 %77
  %81 = vset.pattern.permute.xlu0 0
  %82 = vperm.xlu0 %81, %v20
  %v83 = vpop.permute.xlu0 %82
  %86 = vset.pattern.permute.xlu0 0
  %87 = vperm.xlu0 %86, %v21
  %v88 = vpop.permute.xlu0 %87
  %91 = vset.pattern.permute.xlu0 0
  %92 = vperm.xlu0 %91, %v22
  %v93 = vpop.permute.xlu0 %92
  %96 = vset.pattern.permute.xlu0 0
  %97 = vperm.xlu0 %96, %v23
  %v98 = vpop.permute.xlu0 %97
  %101 = vset.pattern.permute.xlu0 0
  %102 = vperm.xlu0 %101, %v24
  %v103 = vpop.permute.xlu0 %102
  %106 = vset.pattern.permute.xlu0 0
  %107 = vperm.xlu0 %106, %v25
  %v108 = vpop.permute.xlu0 %107
  %111 = vset.pattern.permute.xlu0 0
  %112 = vperm.xlu0 %111, %v26
  %v113 = vpop.permute.xlu0 %112
  %116 = vset.pattern.permute.xlu0 0
  %117 = vperm.xlu0 %116, %v27
  %v118 = vpop.permute.xlu0 %117
  %121 = vset.pattern.permute.xlu0 0
  %122 = vperm.xlu0 %121, %v28
  %v123 = vpop.permute.xlu0 %122
  %126 = vset.pattern.permute.xlu0 0
  %127 = vperm.xlu0 %126, %v29
  %v128 = vpop.permute.xlu0 %127
  %131 = vset.pattern.permute.xlu0 0
  %132 = vperm.xlu0 %131, %v30
  %v133 = vpop.permute.xlu0 %132
  %136 = vset.pattern.permute.xlu0 0
  %137 = vperm.xlu0 %136, %v31
  %v138 = vpop.permute.xlu0 %137
  %141 = vset.pattern.permute.xlu0 0
  %142 = vperm.xlu0 %141, %v32
  %v143 = vpop.permute.xlu0 %142
  %146 = vset.pattern.permute.xlu0 0
  %147 = vperm.xlu0 %146, %v33
  %v148 = vpop.permute.xlu0 %147
  %151 = vset.pattern.permute.xlu0 0
  %152 = vperm.xlu0 %151, %v34
  %v153 = vpop.permute.xlu0 %152
  %156 = vset.pattern.permute.xlu0 0
  %157 = vperm.xlu0 %156, %v35
  %v158 = vpop.permute.xlu0 %157
  %161 = vset.pattern.permute.xlu0 0
  %162 = vperm.xlu0 %161, %v36
  %v163 = vpop.permute.xlu0 %162
  %166 = vset.pattern.permute.xlu0 0
  %167 = vperm.xlu0 %166, %v37
  %v168 = vpop.permute.xlu0 %167
  %171 = vset.pattern.permute.xlu0 0
  %172 = vperm.xlu0 %171, %v38
  %v173 = vpop.permute.xlu0 %172
  %176 = vset.pattern.permute.xlu0 0
  %177 = vperm.xlu0 %176, %v39
  %v178 = vpop.permute.xlu0 %177
  %181 = vset.pattern.permute.xlu0 0
  %182 = vperm.xlu0 %181, %v40
  %v183 = vpop.permute.xlu0 %182
  %186 = vset.pattern.permute.xlu0 0
  %187 = vperm.xlu0 %186, %v41
  %v188 = vpop.permute.xlu0 %187
  %191 = vset.pattern.permute.xlu0 0
  %192 = vperm.xlu0 %191, %v42
  %v193 = vpop.permute.xlu0 %192
  %196 = vset.pattern.permute.xlu0 0
  %197 = vperm.xlu0 %196, %v43
  %v198 = vpop.permute.xlu0 %197
  %201 = vset.pattern.permute.xlu0 0
  %202 = vperm.xlu0 %201, %v44
  %v203 = vpop.permute.xlu0 %202
  %v205 = vsub.f32 %v48, %v12
  %v206 = vsub.f32 %v53, %v12
  %v207 = vsub.f32 %v58, %v12
  %v208 = vsub.f32 %v63, %v12
  %v209 = vsub.f32 %v68, %v12
  %v210 = vsub.f32 %v73, %v12
  %v211 = vsub.f32 %v78, %v12
  %v212 = vsub.f32 %v83, %v12
  %v213 = vsub.f32 %v88, %v12
  %v214 = vsub.f32 %v93, %v12
  %v215 = vsub.f32 %v98, %v12
  %v216 = vsub.f32 %v103, %v12
  %v217 = vsub.f32 %v108, %v12
  %v218 = vsub.f32 %v113, %v12
  %v219 = vsub.f32 %v118, %v12
  %v220 = vsub.f32 %v123, %v12
  %v221 = vsub.f32 %v128, %v12
  %v222 = vsub.f32 %v133, %v12
  %v223 = vsub.f32 %v138, %v12
  %v224 = vsub.f32 %v143, %v12
  %v225 = vsub.f32 %v148, %v12
  %v226 = vsub.f32 %v153, %v12
  %v227 = vsub.f32 %v158, %v12
  %v228 = vsub.f32 %v163, %v12
  %v229 = vsub.f32 %v168, %v12
  %v230 = vsub.f32 %v173, %v12
  %v231 = vsub.f32 %v178, %v12
  %v232 = vsub.f32 %v183, %v12
  %v233 = vsub.f32 %v188, %v12
  %v234 = vsub.f32 %v193, %v12
  %v235 = vsub.f32 %v198, %v12
  %v236 = vsub.f32 %v203, %v12
  %v237 = vmul.f32 %v205, %v205
  %v238 = vmul.f32 %v206, %v206
  %v239 = vmul.f32 %v207, %v207
  %v240 = vmul.f32 %v208, %v208
  %v241 = vmul.f32 %v209, %v209
  %v242 = vmul.f32 %v210, %v210
  %v243 = vmul.f32 %v211, %v211
  %v244 = vmul.f32 %v212, %v212
  %v245 = vmul.f32 %v213, %v213
  %v246 = vmul.f32 %v214, %v214
  %v247 = vmul.f32 %v215, %v215
  %v248 = vmul.f32 %v216, %v216
  %v249 = vmul.f32 %v217, %v217
  %v250 = vmul.f32 %v218, %v218
  %v251 = vmul.f32 %v219, %v219
  %v252 = vmul.f32 %v220, %v220
  %v253 = vmul.f32 %v221, %v221
  %v254 = vmul.f32 %v222, %v222
  %v255 = vmul.f32 %v223, %v223
  %v256 = vmul.f32 %v224, %v224
  %v257 = vmul.f32 %v225, %v225
  %v258 = vmul.f32 %v226, %v226
  %v259 = vmul.f32 %v227, %v227
  %v260 = vmul.f32 %v228, %v228
  %v261 = vmul.f32 %v229, %v229
  %v262 = vmul.f32 %v230, %v230
  %v263 = vmul.f32 %v231, %v231
  %v264 = vmul.f32 %v232, %v232
  %v265 = vmul.f32 %v233, %v233
  %v266 = vmul.f32 %v234, %v234
  %v267 = vmul.f32 %v235, %v235
  %v268 = vmul.f32 %v236, %v236
  %v269 = vmul.f32 %v237, -48.02
  %v270 = vmul.f32 %v238, -48.02
  %v271 = vmul.f32 %v239, -48.02
  %v272 = vmul.f32 %v240, -48.02
  %v273 = vmul.f32 %v241, -48.02
  %v274 = vmul.f32 %v242, -48.02
  %v275 = vmul.f32 %v243, -48.02
  %v276 = vmul.f32 %v244, -48.02
  %v277 = vmul.f32 %v245, -48.02
  %v278 = vmul.f32 %v246, -48.02
  %v279 = vmul.f32 %v247, -48.02
  %v280 = vmul.f32 %v248, -48.02
  %v281 = vmul.f32 %v249, -48.02
  %v282 = vmul.f32 %v250, -48.02
  %v283 = vmul.f32 %v251, -48.02
  %v284 = vmul.f32 %v252, -48.02
  %v285 = vmul.f32 %v253, -48.02
  %v286 = vmul.f32 %v254, -48.02
  %v287 = vmul.f32 %v255, -48.02
  %v288 = vmul.f32 %v256, -48.02
  %v289 = vmul.f32 %v257, -48.02
  %v290 = vmul.f32 %v258, -48.02
  %v291 = vmul.f32 %v259, -48.02
  %v292 = vmul.f32 %v260, -48.02
  %v293 = vmul.f32 %v261, -48.02
  %v294 = vmul.f32 %v262, -48.02
  %v295 = vmul.f32 %v263, -48.02
  %v296 = vmul.f32 %v264, -48.02
  %v297 = vmul.f32 %v265, -48.02
  %v298 = vmul.f32 %v266, -48.02
  %v299 = vmul.f32 %v267, -48.02
  %v300 = vmul.f32 %v268, -48.02
  %v301 = vmul.f32 %v269, 1.442695
  %v302 = vpow.pop %v301
  %v303 = vmul.f32 %v270, 1.442695
  %v304 = vpow.pop %v303
  %v305 = vmul.f32 %v271, 1.442695
  %v306 = vpow.pop %v305
  %v307 = vmul.f32 %v272, 1.442695
  %v308 = vpow.pop %v307
  %v309 = vmul.f32 %v273, 1.442695
  %v310 = vpow.pop %v309
  %v311 = vmul.f32 %v274, 1.442695
  %v312 = vpow.pop %v311
  %v313 = vmul.f32 %v275, 1.442695
  %v314 = vpow.pop %v313
  %v315 = vmul.f32 %v276, 1.442695
  %v316 = vpow.pop %v315
  %v317 = vmul.f32 %v277, 1.442695
  %v318 = vpow.pop %v317
  %v319 = vmul.f32 %v278, 1.442695
  %v320 = vpow.pop %v319
  %v321 = vmul.f32 %v279, 1.442695
  %v322 = vpow.pop %v321
  %v323 = vmul.f32 %v280, 1.442695
  %v324 = vpow.pop %v323
  %v325 = vmul.f32 %v281, 1.442695
  %v326 = vpow.pop %v325
  %v327 = vmul.f32 %v282, 1.442695
  %v328 = vpow.pop %v327
  %v329 = vmul.f32 %v283, 1.442695
  %v330 = vpow.pop %v329
  %v331 = vmul.f32 %v284, 1.442695
  %v332 = vpow.pop %v331
  %v333 = vmul.f32 %v285, 1.442695
  %v334 = vpow.pop %v333
  %v335 = vmul.f32 %v286, 1.442695
  %v336 = vpow.pop %v335
  %v337 = vmul.f32 %v287, 1.442695
  %v338 = vpow.pop %v337
  %v339 = vmul.f32 %v288, 1.442695
  %v340 = vpow.pop %v339
  %v341 = vmul.f32 %v289, 1.442695
  %v342 = vpow.pop %v341
  %v343 = vmul.f32 %v290, 1.442695
  %v344 = vpow.pop %v343
  %v345 = vmul.f32 %v291, 1.442695
  %v346 = vpow.pop %v345
  %v347 = vmul.f32 %v292, 1.442695
  %v348 = vpow.pop %v347
  %v349 = vmul.f32 %v293, 1.442695
  %v350 = vpow.pop %v349
  %v351 = vmul.f32 %v294, 1.442695
  %v352 = vpow.pop %v351
  %v353 = vmul.f32 %v295, 1.442695
  %v354 = vpow.pop %v353
  %v355 = vmul.f32 %v296, 1.442695
  %v356 = vpow.pop %v355
  %v357 = vmul.f32 %v297, 1.442695
  %v358 = vpow.pop %v357
  %v359 = vmul.f32 %v298, 1.442695
  %v360 = vpow.pop %v359
  %v361 = vmul.f32 %v299, 1.442695
  %v362 = vpow.pop %v361
  %v363 = vmul.f32 %v300, 1.442695
  %v364 = vpow.pop %v363
  %vm365 = vcmask 408576
  %366 = vst.msk [vmem:[%s1] sm:$0xff] %vm365, %v302
  %367 = vst.msk [vmem:[%s1 + $0x8] sm:$0xff] %vm365, %v304
  %368 = vst.msk [vmem:[%s1 + $0x10] sm:$0xff] %vm365, %v306
  %369 = vst.msk [vmem:[%s1 + $0x18] sm:$0xff] %vm365, %v308
  %370 = vst.msk [vmem:[%s1 + $0x20] sm:$0xff] %vm365, %v310
  %371 = vst.msk [vmem:[%s1 + $0x28] sm:$0xff] %vm365, %v312
  %372 = vst.msk [vmem:[%s1 + $0x30] sm:$0xff] %vm365, %v314
  %373 = vst.msk [vmem:[%s1 + $0x38] sm:$0xff] %vm365, %v316
  %374 = vst.msk [vmem:[%s1 + $0x40] sm:$0xff] %vm365, %v318
  %375 = vst.msk [vmem:[%s1 + $0x48] sm:$0xff] %vm365, %v320
  %376 = vst.msk [vmem:[%s1 + $0x50] sm:$0xff] %vm365, %v322
  %377 = vst.msk [vmem:[%s1 + $0x58] sm:$0xff] %vm365, %v324
  %378 = vst.msk [vmem:[%s1 + $0x60] sm:$0xff] %vm365, %v326
  %379 = vst.msk [vmem:[%s1 + $0x68] sm:$0xff] %vm365, %v328
  %380 = vst.msk [vmem:[%s1 + $0x70] sm:$0xff] %vm365, %v330
  %381 = vst.msk [vmem:[%s1 + $0x78] sm:$0xff] %vm365, %v332
  %382 = vst.msk [vmem:[%s1 + $0x80] sm:$0xff] %vm365, %v334
  %383 = vst.msk [vmem:[%s1 + $0x88] sm:$0xff] %vm365, %v336
  %384 = vst.msk [vmem:[%s1 + $0x90] sm:$0xff] %vm365, %v338
  %385 = vst.msk [vmem:[%s1 + $0x98] sm:$0xff] %vm365, %v340
  %386 = vst.msk [vmem:[%s1 + $0xa0] sm:$0xff] %vm365, %v342
  %387 = vst.msk [vmem:[%s1 + $0xa8] sm:$0xff] %vm365, %v344
  %388 = vst.msk [vmem:[%s1 + $0xb0] sm:$0xff] %vm365, %v346
  %389 = vst.msk [vmem:[%s1 + $0xb8] sm:$0xff] %vm365, %v348
  %390 = vst.msk [vmem:[%s1 + $0xc0] sm:$0xff] %vm365, %v350
  %391 = vst.msk [vmem:[%s1 + $0xc8] sm:$0xff] %vm365, %v352
  %392 = vst.msk [vmem:[%s1 + $0xd0] sm:$0xff] %vm365, %v354
  %393 = vst.msk [vmem:[%s1 + $0xd8] sm:$0xff] %vm365, %v356
  %394 = vst.msk [vmem:[%s1 + $0xe0] sm:$0xff] %vm365, %v358
  %395 = vst.msk [vmem:[%s1 + $0xe8] sm:$0xff] %vm365, %v360
  %396 = vst.msk [vmem:[%s1 + $0xf0] sm:$0xff] %vm365, %v362
  %397 = vst.msk [vmem:[%s1 + $0xf8] sm:$0xff] %vm365, %v364
  // Predicated region
  $region6: #{tpu_custom_call.1} parent=0 // pred_check
    _
  $region7: #{tpu_custom_call.1} parent=0 // pred_check_branch
    %399 = sbr.rel (0) target = $region9
  $region8: #{tpu_custom_call.1} parent=0 // pred_region
    _
  $region9: #{tpu_custom_call.1} parent=0 // pred_fallthru
    _
  // Predicated region
  $region10: #{tpu_custom_call.1} parent=0 // pred_check
    _
  $region11: #{tpu_custom_call.1} parent=0 // pred_check_branch
    %401 = sbr.rel (0) target = $region13
  $region12: #{tpu_custom_call.1} parent=0 // pred_region
    _
  $region13: #{tpu_custom_call.1} parent=0 // pred_fallthru
    _

</llo_original>
